<compile_context>
chip_gen: v7x
topology: tpu7x:2x2x1
jax: 0.10.0
libtpu: 0.0.40
codegen_flags: <defaults>
</compile_context>

<pallas_src>
import jax
import jax.numpy as jnp
from jax import lax
from jax.experimental import pallas as pl
from jax.experimental.pallas import tpu as pltpu


def _make_label_ce_kernel(bins_per_semitone: int, batch_size: int, tile_rows: int):
    bps = float(bins_per_semitone)
    spread = 0.2 * bps
    inv_two_spread_sq = 1.0 / (2.0 * spread * spread)

    def kernel(xidx_ref, pred_ref, tgt_ref, out_ref):
        i = pl.program_id(0)

        pred = pred_ref[...].astype(jnp.float32)            # (TB, C)
        tgt = tgt_ref[...].astype(jnp.float32)              # (TB, 1)
        TB, C = pred.shape

        # Mask rows of the padded tail tile and unlabeled (NaN) rows.
        row = i * tile_rows + lax.broadcasted_iota(jnp.int32, (TB, 1), 0)
        valid = row < batch_size                            # (TB, 1) bool
        labeled = jnp.logical_and(valid, jnp.logical_not(jnp.isnan(tgt)))

        tgt_safe = jnp.where(labeled, tgt, 0.0)             # sanitize NaN
        centre = tgt_safe * bps                             # (TB, 1)

        # Gaussian-peak soft target; class-index row is a hoisted constant input.
        x = xidx_ref[...]                                   # (1, C) f32
        d = x - centre                                      # (TB, C)
        soft = jnp.exp(-(d * d) * inv_two_spread_sq)

        # Stable log-sum-exp over class dim; logp is never materialized:
        #   -sum(soft * (z - lse)) = sum(soft) * lse - sum(soft * z)
        m = jnp.max(pred, axis=-1, keepdims=True)
        z = pred - m
        lse = jnp.log(jnp.sum(jnp.exp(z), axis=-1, keepdims=True))
        s0 = jnp.sum(soft, axis=-1, keepdims=True)
        s1 = jnp.sum(soft * z, axis=-1, keepdims=True)
        per_row = s0 * lse - s1                             # (TB, 1)
        per_row = jnp.where(labeled, per_row, 0.0)          # garbage rows -> 0

        # Per-block partial sums (reduced in the wrapper).
        out_ref[0, 0] = jnp.sum(per_row)
        out_ref[0, 1] = jnp.sum(labeled.astype(jnp.float32))

    return kernel


def label_cross_entropy(pred: jax.Array, target: jax.Array,
                        bins_per_semitone: int = 1,
                        tile_rows: int | None = None) -> jax.Array:
    """pred: (B, 128*bps) float (f32 or bf16); target: (B,) float, NaN = unlabeled."""
    B, C = pred.shape
    assert C == 128 * bins_per_semitone
    tgt2d = target.astype(jnp.float32).reshape(B, 1)
    x_idx = jnp.arange(C, dtype=jnp.float32).reshape(1, C)

    itemsize = jnp.dtype(pred.dtype).itemsize
    if tile_rows is None:
        # ~512 KiB pred blocks: large enough to reach ~85% of HBM roofline,
        # small enough to fit scoped VMEM on every generation (incl. v7x).
        target_bytes = 512 * 1024
        tb = max(8, (target_bytes // (C * itemsize)) // 8 * 8)
        tb = min(tb, 4096)
    else:
        tb = max(8, (tile_rows // 8) * 8)
    b_pad = ((B + 7) // 8) * 8
    tb = min(tb, b_pad)
    num_blocks = -(-B // tb)

    block_bytes = tb * C * itemsize
    vmem_limit = int(min(32 * 1024 * 1024,
                         max(16 * 1024 * 1024, 12 * block_bytes)))

    cost = pl.CostEstimate(
        flops=10 * B * C,
        transcendentals=2 * B * C,
        bytes_accessed=B * C * itemsize + B * 4 + num_blocks * 2 * 4 + C * 4,
    )

    partials = pl.pallas_call(
        _make_label_ce_kernel(bins_per_semitone, B, tb),
        grid=(num_blocks,),
        out_shape=jax.ShapeDtypeStruct((num_blocks, 2), jnp.float32),
        in_specs=[
            pl.BlockSpec((1, C), lambda i: (0, 0)),        # class-index arange
            pl.BlockSpec((tb, C), lambda i: (i, 0)),       # pred tile
            pl.BlockSpec((tb, 1), lambda i: (i, 0)),       # target tile
        ],
        out_specs=pl.BlockSpec((1, 2), lambda i: (i, 0), memory_space=pltpu.SMEM),
        compiler_params=pltpu.CompilerParams(
            dimension_semantics=("parallel",),
            vmem_limit_bytes=vmem_limit,
        ),
        cost_estimate=cost,
    )(x_idx, pred, tgt2d)

    loss_sum = jnp.sum(partials[:, 0])
    n = jnp.sum(partials[:, 1])
    return jnp.where(n > 0.0, loss_sum / jnp.maximum(n, 1.0), 0.0)


def _reference(pred, target, bps):
    """Pure-JAX reference mirroring the PyTorch forward (absolute mode)."""
    labeled = ~jnp.isnan(target)
    n = jnp.sum(labeled)
    C = pred.shape[1]
    centre = jnp.where(labeled, target, 0.0)[:, None] * bps
    x = jnp.arange(C, dtype=jnp.float32)[None, :]
    soft = jnp.exp(-((x - centre) ** 2) / (2.0 * (0.2 * bps) ** 2))
    logp = jax.nn.log_softmax(pred.astype(jnp.float32), axis=-1)
    per_row = -jnp.sum(soft * logp, axis=-1)
    per_row = jnp.where(labeled, per_row, 0.0)
    return jnp.where(n > 0, jnp.sum(per_row) / jnp.maximum(n, 1), 0.0)


if __name__ == "__main__":
    bps = 1                        # bins_per_semitone -> num_classes = 128
    B, C = 8, 128 * bps

    key = jax.random.PRNGKey(0)
    k_pred, k_tgt = jax.random.split(key)
    pred = jax.random.normal(k_pred, (B, C), dtype=jnp.float32)
    target = jax.random.uniform(k_tgt, (B,), minval=0.0, maxval=127.0,
                                dtype=jnp.float32)
    target = target.at[3].set(jnp.nan)         # one unlabeled row

    loss = label_cross_entropy(pred, target, bins_per_semitone=bps)
    jax.block_until_ready(loss)
    ref = _reference(pred, target, bps)
    assert jnp.allclose(loss, ref, rtol=1e-5, atol=1e-5), (loss, ref)

    # Multi-block grid + tail masking (B not a multiple of the tile).
    B2 = 20
    k2p, k2t = jax.random.split(jax.random.PRNGKey(1))
    pred2 = jax.random.normal(k2p, (B2, C), dtype=jnp.float32)
    target2 = jax.random.uniform(k2t, (B2,), minval=0.0, maxval=127.0,
                                 dtype=jnp.float32)
    target2 = target2.at[0].set(jnp.nan)
    target2 = target2.at[17].set(jnp.nan)
    loss2 = label_cross_entropy(pred2, target2, bins_per_semitone=bps,
                                tile_rows=8)
    jax.block_until_ready(loss2)
    ref2 = _reference(pred2, target2, bps)
    assert jnp.allclose(loss2, ref2, rtol=1e-5, atol=1e-5), (loss2, ref2)

    # All-unlabeled path returns 0 (matches `pred.sum() * 0.0`).
    loss3 = label_cross_entropy(pred, jnp.full((B,), jnp.nan, jnp.float32),
                                bins_per_semitone=bps)
    jax.block_until_ready(loss3)
    assert jnp.allclose(loss3, 0.0), loss3

    # TODO(synk): 'octave' and 'distance' modes (gaussian_cosine_tensor /
    # reduce_activations) not exercised; default 'absolute' mode implemented.
    print("KERNEL_OK")
</pallas_src>

<mosaic_0001>
module attributes {stable_mosaic.version = 11 : i64} {
  func.func @kernel(%arg0: i32, %arg1: memref<1x128xf32, #tpu.memory_space<vmem>>, %arg2: memref<8x128xf32, #tpu.memory_space<vmem>>, %arg3: memref<8x1xf32, #tpu.memory_space<vmem>>, %arg4: memref<1x2xf32, #tpu.memory_space<smem>>) attributes {dimension_semantics = [#tpu.dimension_semantics<parallel>], iteration_bounds = array<i64: 1>, scalar_prefetch = 0 : i64, scratch_operands = 0 : i64, tpu.core_type = #tpu.core_type<tc>, window_params = [{pipeline_mode = #tpu.pipeline_mode<synchronous>, transform_indices = @transform_0, window_bounds = array<i64: 1, 128>}, {transform_indices = @transform_1, window_bounds = array<i64: 8, 128>}, {transform_indices = @transform_2, window_bounds = array<i64: 8, 1>}, {transform_indices = @transform_3, window_bounds = array<i64: 1, 2>}]} {
    %c0 = arith.constant 0 : index
    %c0_0 = arith.constant 0 : index
    %0 = vector.load %arg2[%c0, %c0_0] : memref<8x128xf32, #tpu.memory_space<vmem>>, vector<8x128xf32>
    %c0_1 = arith.constant 0 : index
    %c0_2 = arith.constant 0 : index
    %1 = vector.load %arg3[%c0_1, %c0_2] : memref<8x1xf32, #tpu.memory_space<vmem>>, vector<8x1xf32>
    %c8_i32 = arith.constant 8 : i32
    %2 = arith.muli %arg0, %c8_i32 : i32
    %3 = tpu.iota {dimensions = array<i32: 0>} : vector<8x1xi32>
    %4 = vector.broadcast %2 : i32 to vector<8x1xi32>
    %5 = arith.addi %4, %3 : vector<8x1xi32>
    %c8_i32_3 = arith.constant 8 : i32
    %6 = vector.broadcast %c8_i32_3 : i32 to vector<8x1xi32>
    %7 = arith.cmpi slt, %5, %6 : vector<8x1xi32>
    %8 = arith.cmpf one, %1, %1 : vector<8x1xf32>
    %cst = arith.constant dense<true> : vector<8x1xi1>
    %9 = arith.xori %8, %cst : vector<8x1xi1>
    %10 = arith.andi %7, %9 : vector<8x1xi1>
    %cst_4 = arith.constant 0.000000e+00 : f32
    %11 = vector.broadcast %cst_4 : f32 to vector<8x1xf32>
    %12 = arith.select %10, %1, %11 : vector<8x1xi1>, vector<8x1xf32>
    %cst_5 = arith.constant 1.000000e+00 : f32
    %13 = vector.broadcast %cst_5 : f32 to vector<8x1xf32>
    %14 = arith.mulf %12, %13 : vector<8x1xf32>
    %c0_6 = arith.constant 0 : index
    %c0_7 = arith.constant 0 : index
    %15 = vector.load %arg1[%c0_6, %c0_7] : memref<1x128xf32, #tpu.memory_space<vmem>>, vector<1x128xf32>
    %16 = vector.broadcast %15 : vector<1x128xf32> to vector<8x128xf32>
    %17 = vector.broadcast %14 : vector<8x1xf32> to vector<8x128xf32>
    %18 = arith.subf %16, %17 : vector<8x128xf32>
    %19 = arith.mulf %18, %18 : vector<8x128xf32>
    %cst_8 = arith.constant 0.000000e+00 : f32
    %20 = vector.broadcast %cst_8 : f32 to vector<8x128xf32>
    %21 = arith.subf %20, %19 : vector<8x128xf32>
    %cst_9 = arith.constant 1.250000e+01 : f32
    %22 = vector.broadcast %cst_9 : f32 to vector<8x128xf32>
    %23 = arith.mulf %21, %22 : vector<8x128xf32>
    %24 = math.exp %23 : vector<8x128xf32>
    %cst_10 = arith.constant dense<0xFF800000> : vector<8xf32>
    %25 = vector.multi_reduction <maximumf>, %0, %cst_10 [1] : vector<8x128xf32> to vector<8xf32>
    %26 = vector.shape_cast %25 : vector<8xf32> to vector<8x1xf32>
    %27 = vector.broadcast %26 : vector<8x1xf32> to vector<8x128xf32>
    %28 = arith.subf %0, %27 : vector<8x128xf32>
    %29 = math.exp %28 : vector<8x128xf32>
    %cst_11 = arith.constant dense<0.000000e+00> : vector<8xf32>
    %30 = vector.multi_reduction <add>, %29, %cst_11 [1] : vector<8x128xf32> to vector<8xf32>
    %31 = vector.shape_cast %30 : vector<8xf32> to vector<8x1xf32>
    %32 = math.log %31 : vector<8x1xf32>
    %cst_12 = arith.constant dense<0.000000e+00> : vector<8xf32>
    %33 = vector.multi_reduction <add>, %24, %cst_12 [1] : vector<8x128xf32> to vector<8xf32>
    %34 = vector.shape_cast %33 : vector<8xf32> to vector<8x1xf32>
    %35 = arith.mulf %24, %28 : vector<8x128xf32>
    %cst_13 = arith.constant dense<0.000000e+00> : vector<8xf32>
    %36 = vector.multi_reduction <add>, %35, %cst_13 [1] : vector<8x128xf32> to vector<8xf32>
    %37 = vector.shape_cast %36 : vector<8xf32> to vector<8x1xf32>
    %38 = arith.mulf %34, %32 : vector<8x1xf32>
    %39 = arith.subf %38, %37 : vector<8x1xf32>
    %cst_14 = arith.constant 0.000000e+00 : f32
    %40 = vector.broadcast %cst_14 : f32 to vector<8x1xf32>
    %41 = arith.select %10, %39, %40 : vector<8x1xi1>, vector<8x1xf32>
    %42 = vector.shape_cast %41 : vector<8x1xf32> to vector<1x8x1xf32>
    %cst_15 = arith.constant dense<0.000000e+00> : vector<1xf32>
    %43 = vector.multi_reduction <add>, %42, %cst_15 [1, 2] : vector<1x8x1xf32> to vector<1xf32>
    %44 = vector.shape_cast %43 : vector<1xf32> to vector<1x1x1xf32>
    %45 = vector.extract %44[0, 0, 0] : f32 from vector<1x1x1xf32>
    %c0_16 = arith.constant 0 : index
    %c0_17 = arith.constant 0 : index
    %46 = memref.load %arg4[%c0_16, %c0_17] : memref<1x2xf32, #tpu.memory_space<smem>>
    memref.store %45, %arg4[%c0_16, %c0_17] : memref<1x2xf32, #tpu.memory_space<smem>>
    %47 = arith.extui %10 : vector<8x1xi1> to vector<8x1xi32>
    %48 = arith.sitofp %47 : vector<8x1xi32> to vector<8x1xf32>
    %49 = vector.shape_cast %48 : vector<8x1xf32> to vector<1x8x1xf32>
    %cst_18 = arith.constant dense<0.000000e+00> : vector<1xf32>
    %50 = vector.multi_reduction <add>, %49, %cst_18 [1, 2] : vector<1x8x1xf32> to vector<1xf32>
    %51 = vector.shape_cast %50 : vector<1xf32> to vector<1x1x1xf32>
    %52 = vector.extract %51[0, 0, 0] : f32 from vector<1x1x1xf32>
    %c0_19 = arith.constant 0 : index
    %c1 = arith.constant 1 : index
    %53 = memref.load %arg4[%c0_19, %c1] : memref<1x2xf32, #tpu.memory_space<smem>>
    memref.store %52, %arg4[%c0_19, %c1] : memref<1x2xf32, #tpu.memory_space<smem>>
    return
  }
  func.func @transform_0(%arg0: i32) -> (i32, i32) {
    %c0_i32 = arith.constant 0 : i32
    %c0_i32_0 = arith.constant 0 : i32
    %c0_i32_1 = arith.constant 0 : i32
    return %c0_i32, %c0_i32_0 : i32, i32
  }
  func.func @transform_1(%arg0: i32) -> (i32, i32) {
    %c0_i32 = arith.constant 0 : i32
    %c0_i32_0 = arith.constant 0 : i32
    return %arg0, %c0_i32 : i32, i32
  }
  func.func @transform_2(%arg0: i32) -> (i32, i32) {
    %c0_i32 = arith.constant 0 : i32
    %c0_i32_0 = arith.constant 0 : i32
    return %arg0, %c0_i32 : i32, i32
  }
  func.func @transform_3(%arg0: i32) -> (i32, i32) {
    %c0_i32 = arith.constant 0 : i32
    %c0_i32_0 = arith.constant 0 : i32
    return %arg0, %c0_i32 : i32, i32
  }
}

</mosaic_0001>

<llo_original>
// kernel: tpu_custom_call.1
$region0: #{tpu_custom_call.1}
  #allocation0 [shape = 'u32[]', space=smem, size = 0x4, offset = 0x4, fixed_abs, tag = 'smem constant byte address 0x4 - core index']
  #allocation1 [shape = 'u32[144,128]{1,0:T(1,128)}', space=vmem, size = 0x12000, scoped, tag = 'internal scratch']
  %s0 = inlined_call_operand.vmem [shape: f32[1,128], index: 0, kind: input, shape index: {}]
  %s1 = inlined_call_operand.vmem [shape: f32[8,128], index: 1, kind: input, shape index: {}]
  %s2 = inlined_call_operand.vmem [shape: f32[8,1], index: 2, kind: input, shape index: {}]
  %s3 = inlined_call_operand.hbm [shape: f32[1,2], index: 3, kind: output, shape index: {}]
  %s4 = sld [smem:[#allocation0]]
  $region22: #{tpu_custom_call.1} parent=0
    _
  %s6 = ssub.s32 1, %s4
  %s7 = scalar_select 0, %s6, %s4
  $region1: #{tpu_custom_call.1} parent=0
    #allocation2 [shape = 'u8[512]{0}', space=smem, size = 0x200, scoped, tag = 'output window, operand 0, single buffered']
    #allocation3 [shape = 's32[1]{0}', space=sflag, size = 0x4, scoped, tag = 'scoped memory for tpu_custom_call.1']
    %8 = vsyncpa [#allocation3], 0
    // Predicated region
    $region2: #{tpu_custom_call.1} parent=1 // pred_check
      _
    $region3: #{tpu_custom_call.1} parent=1 // pred_check_branch
      %10 = sbr.rel (0) target = $region5
    $region4: #{tpu_custom_call.1} parent=1 // pred_region
      _
    $region5: #{tpu_custom_call.1} parent=1 // pred_fallthru
      _
    // Predicated region
    $region6: #{tpu_custom_call.1} parent=1 // pred_check
      _
    $region7: #{tpu_custom_call.1} parent=1 // pred_check_branch
      %12 = sbr.rel (0) target = $region9
    $region8: #{tpu_custom_call.1} parent=1 // pred_region
      _
    $region9: #{tpu_custom_call.1} parent=1 // pred_fallthru
      _
    // Predicated region
    $region10: #{tpu_custom_call.1} parent=1 // pred_check
      _
    $region11: #{tpu_custom_call.1} parent=1 // pred_check_branch
      %14 = sbr.rel (0) target = $region13
    $region12: #{tpu_custom_call.1} parent=1 // pred_region
      _
    $region13: #{tpu_custom_call.1} parent=1 // pred_fallthru
      _
    %v15 = vld [vmem:[%s1] sm:$0xff]
    %v16 = vld [vmem:[%s2] sm:$0xff]
    %s17 = smul.u32 0, 8
    %v18 = vlaneseq
    %v19 = vshrl.u32 %v18, 7
    %v20 = vstv %s17
    %v21 = vadd.s32 %v20, %v19
    %vm22 = vcmp.lt.s32.totalorder %v21, 8
    %vm23 = vcmp.ne.f32.partialorder %v16, %v16
    %vm24 = vmxor %vm23, 1
    %vm25 = vmand %vm22, %vm24
    %v26 = vsel %vm25, %v16, 0.0
    %v27 = vld [vmem:[%s0] sm:$0x1]
    %v29 = vlaneseq
    %v30 = vshrl.u32 %v29, 7
    %v31 = vsub.s32 0, %v30
    %v32 = vrot.slane %v27, %v31
    %35 = vset.pattern.permute.xlu0 0
    %36 = vperm.xlu0 %35, %v26
    %v37 = vpop.permute.xlu0 %36
    %v39 = vsub.f32 %v32, %v37
    %v40 = vmul.f32 %v39, %v39
    %v41 = vsub.f32 0.0, %v40
    %v42 = vmul.f32 %v41, 12.5
    %v43 = vmul.f32 %v42, 1.442695
    %v44 = vpow.pop %v43
    %45 = vmax.xlane.f32.xlu0 %v15
    %v46 = vpop.xlane.xlu0 %45
    %v47 = vsub.f32 %v15, %v46
    %v48 = vmul.f32 %v47, 1.442695
    %v49 = vpow.pop %v48
    %50 = vadd.xlane.f32.xlu0 %v49
    %v51 = vpop.xlane.xlu0 %50
    %v52 = vlog2.pop %v51
    %v53 = vmul.f32 %v52, 0.6931472
    %54 = vadd.xlane.f32.xlu0 %v44
    %v55 = vpop.xlane.xlu0 %54
    %v56 = vmul.f32 %v44, %v47
    %57 = vadd.xlane.f32.xlu0 %v56
    %v58 = vpop.xlane.xlu0 %57
    %v59 = vmul.f32 %v55, %v53
    %v60 = vsub.f32 %v59, %v58
    %v61 = vsel %vm25, %v60, 0.0
    %vm62 = vcmask 7168
    %v63 = vsel %vm62, %v61, 0.0
    %64 = vadd.xlane.f32.xlu0 %v63
    %v65 = vpop.xlane.xlu0 %64
    %v66 = vrot.slane %v65, 4
    %v67 = vadd.f32 %v65, %v66
    %v68 = vrot.slane %v67, 2
    %v69 = vadd.f32 %v67, %v68
    %v70 = vrot.slane %v69, 1
    %v71 = vadd.f32 %v69, %v70
    %s72 = vtos %v71
    %s73 = scalar_lea.smem [#allocation2], 0
    %74 = sst [smem:[%s73]] %s72
    %v75 = vsel %vm25, 1, 0
    %v76 = vcvt.s32.f32 %v75
    %v77 = vsel %vm62, %v76, 0.0
    %78 = vadd.xlane.f32.xlu0 %v77
    %v79 = vpop.xlane.xlu0 %78
    %v80 = vrot.slane %v79, 4
    %v81 = vadd.f32 %v79, %v80
    %v82 = vrot.slane %v81, 2
    %v83 = vadd.f32 %v81, %v82
    %v84 = vrot.slane %v83, 1
    %v85 = vadd.f32 %v83, %v84
    %s86 = vtos %v85
    %s87 = scalar_lea.smem [#allocation2], 1
    %88 = sst [smem:[%s87]] %s86
    // Predicated region
    $region14: #{tpu_custom_call.1} parent=1 // pred_check
      _
    $region15: #{tpu_custom_call.1} parent=1 // pred_check_branch
      %90 = sbr.rel (0) target = $region17
    $region16: #{tpu_custom_call.1} parent=1 // pred_region
      %s92 = ssub.s32 16, 16
      %93 = vsyncadd [#allocation3], %s92
      %96 = dma.smem_to_hbm [#allocation2], 16, %s3, [#allocation3]
    $region17: #{tpu_custom_call.1} parent=1 // pred_fallthru
      _
    // Predicated region
    $region18: #{tpu_custom_call.1} parent=1 // pred_check
      _
    $region19: #{tpu_custom_call.1} parent=1 // pred_check_branch
      %98 = sbr.rel (0) target = $region21
    $region20: #{tpu_custom_call.1} parent=1 // pred_region
      %99 = dma.done [#allocation3], 16
    $region21: #{tpu_custom_call.1} parent=1 // pred_fallthru
      _
    %100 = sfence
    %101 = vsyncpa [#allocation3], 1

</llo_original>
